<compile_context>
chip_gen: v5e
topology: v5e:2x2
jax: 0.10.0
libtpu: 0.0.40
codegen_flags: <defaults>
</compile_context>

<pallas_src>
import functools

import jax
import jax.numpy as jnp
from jax.experimental import pallas as pl
from jax.experimental.pallas import tpu as pltpu


def qnet_kernel(x_ref,
                w1_ref, b1_ref,
                w2_ref, b2_ref,
                w3_ref, b3_ref,
                w4_ref, b4_ref,
                out_ref):
    # fc1 + relu : bf16 MXU matmul, f32 accumulate, f32 bias/ReLU on the VPU
    h = jnp.dot(x_ref[...], w1_ref[...], preferred_element_type=jnp.float32)
    h = jnp.maximum(h + b1_ref[...], 0.0)
    # fc2 + relu
    h = jnp.dot(h.astype(jnp.bfloat16), w2_ref[...],
                preferred_element_type=jnp.float32)
    h = jnp.maximum(h + b2_ref[...], 0.0)
    # fc3 + relu
    h = jnp.dot(h.astype(jnp.bfloat16), w3_ref[...],
                preferred_element_type=jnp.float32)
    h = jnp.maximum(h + b3_ref[...], 0.0)
    # fc4 (no activation); natural (tile_m, action_size) output, no padding
    q = jnp.dot(h.astype(jnp.bfloat16), w4_ref[...],
                preferred_element_type=jnp.float32)
    out_ref[...] = (q + b4_ref[...]).astype(out_ref.dtype)


def _round_up(x, m):
    return ((x + m - 1) // m) * m


def _pick_tile_m(batch):
    """Batch-tile selection.

    * B < 256: one grid step (grid is a serial loop; a split only helps the
      2-TC v7x once there is enough work per core).
    * B >= 256: even number of grid steps (v7x core balance), tiles up to
      2048 rows to amortize the ~0.35us/step overhead.  Tiles are rounded to
      a multiple of 16 rows (bf16 sublane packing) when the batch is blocked.
    """
    if batch < 256:
        return batch
    grid_m = max(2, pl.cdiv(batch, 2048))
    if grid_m % 2:
        grid_m += 1
    return min(2048, _round_up(pl.cdiv(batch, grid_m), 16))


def prepare_params(params):
    """One-time (init-time) conversion to the kernel's layout/dtypes.

    bf16 (in, out) weights for the MXU, f32 (1, out) biases for the VPU add.
    Doing this here keeps the per-call hot path free of eager weight-prep ops.
    """
    prepped = {}
    for i in (1, 2, 3, 4):
        prepped[f"w{i}"] = jnp.asarray(params[f"w{i}"], jnp.bfloat16)
        prepped[f"b{i}"] = jnp.asarray(params[f"b{i}"],
                                       jnp.float32).reshape(1, -1)
    return prepped


@functools.partial(jax.jit, static_argnames=("tile_m",))
def qnetwork_forward(state, params, tile_m=None):
    """state: (B, state_size) float32.  params: output of `prepare_params`.

    Returns (B, action_size) float32 Q-values.
    """
    B, state_size = state.shape
    action_size = params["w4"].shape[1]

    if tile_m is None:
        tile_m = _pick_tile_m(B)
    grid_m = pl.cdiv(B, tile_m)
    B_pad = grid_m * tile_m

    # Cast input once (fuses with the pad under jit); removes a per-tile cast.
    x = state.astype(jnp.bfloat16)
    if B_pad != B:
        x = jnp.pad(x, ((0, B_pad - B), (0, 0)))

    def const_spec(arr):
        # whole (small) array resident in VMEM, same block every grid step
        nd = arr.ndim
        return pl.BlockSpec(arr.shape, lambda i: (0,) * nd)

    out = pl.pallas_call(
        qnet_kernel,
        out_shape=jax.ShapeDtypeStruct((B_pad, action_size), jnp.float32),
        grid_spec=pltpu.PrefetchScalarGridSpec(
            num_scalar_prefetch=0,
            grid=(grid_m,),
            in_specs=[
                pl.BlockSpec((tile_m, state_size), lambda i: (i, 0)),
                const_spec(params["w1"]), const_spec(params["b1"]),
                const_spec(params["w2"]), const_spec(params["b2"]),
                const_spec(params["w3"]), const_spec(params["b3"]),
                const_spec(params["w4"]), const_spec(params["b4"]),
            ],
            # Output block's last dim equals the full array last dim
            # (action_size), so the narrow block is legal; no lane padding.
            out_specs=pl.BlockSpec((tile_m, action_size), lambda i: (i, 0)),
        ),
        compiler_params=pltpu.CompilerParams(
            dimension_semantics=("parallel",)),
    )(x,
      params["w1"], params["b1"],
      params["w2"], params["b2"],
      params["w3"], params["b3"],
      params["w4"], params["b4"])

    if B_pad != B:
        out = out[:B]
    return out


def init_params(key, state_size, action_size):
    """Deterministic synthetic init (PyTorch-like uniform fan-in bound)."""
    dims = [(state_size, 64), (64, 64), (64, 32), (32, action_size)]
    params = {}
    for idx, (fan_in, fan_out) in enumerate(dims, start=1):
        key, kw, kb = jax.random.split(key, 3)
        bound = 1.0 / jnp.sqrt(jnp.float32(fan_in))
        params[f"w{idx}"] = jax.random.uniform(
            kw, (fan_in, fan_out), jnp.float32, -bound, bound)
        # bias kept 2D (1, out) for clean TPU layout; broadcasts over batch
        params[f"b{idx}"] = jax.random.uniform(
            kb, (1, fan_out), jnp.float32, -bound, bound)
    return params


def reference_forward(state, params):
    h = jnp.maximum(state @ params["w1"] + params["b1"], 0.0)
    h = jnp.maximum(h @ params["w2"] + params["b2"], 0.0)
    h = jnp.maximum(h @ params["w3"] + params["b3"], 0.0)
    return h @ params["w4"] + params["b4"]


if __name__ == "__main__":
    key = jax.random.PRNGKey(0)
    state_size, action_size = 8, 4
    batch = 64

    k_params, k_state = jax.random.split(key)
    params_f32 = init_params(k_params, state_size, action_size)
    params = prepare_params(params_f32)          # one-time weight prep
    state = jax.random.normal(k_state, (batch, state_size), jnp.float32)

    q = qnetwork_forward(state, params)
    q = jax.block_until_ready(q)

    q_ref = reference_forward(state, params_f32)
    assert q.shape == (batch, action_size)
    # bf16 MXU matmuls (f32 accumulation) vs. pure-f32 reference: ~1e-3 error,
    # an explicit/accepted numerics choice for this kernel.
    assert jnp.allclose(q, q_ref, atol=1e-2, rtol=1e-2), "mismatch vs reference"

    print("KERNEL_OK")
</pallas_src>

<mosaic_0001>
module attributes {stable_mosaic.version = 11 : i64} {
  func.func @qnet_kernel(%arg0: i32, %arg1: memref<64x8xbf16, #tpu.memory_space<vmem>>, %arg2: memref<8x64xbf16, #tpu.memory_space<vmem>>, %arg3: memref<1x64xf32, #tpu.memory_space<vmem>>, %arg4: memref<64x64xbf16, #tpu.memory_space<vmem>>, %arg5: memref<1x64xf32, #tpu.memory_space<vmem>>, %arg6: memref<64x32xbf16, #tpu.memory_space<vmem>>, %arg7: memref<1x32xf32, #tpu.memory_space<vmem>>, %arg8: memref<32x4xbf16, #tpu.memory_space<vmem>>, %arg9: memref<1x4xf32, #tpu.memory_space<vmem>>, %arg10: memref<64x4xf32, #tpu.memory_space<vmem>>) attributes {dimension_semantics = [#tpu.dimension_semantics<parallel>], iteration_bounds = array<i64: 1>, scalar_prefetch = 0 : i64, scratch_operands = 0 : i64, tpu.core_type = #tpu.core_type<tc>, window_params = [{transform_indices = @transform_0, window_bounds = array<i64: 64, 8>}, {pipeline_mode = #tpu.pipeline_mode<synchronous>, transform_indices = @transform_1, window_bounds = array<i64: 8, 64>}, {pipeline_mode = #tpu.pipeline_mode<synchronous>, transform_indices = @transform_2, window_bounds = array<i64: 1, 64>}, {pipeline_mode = #tpu.pipeline_mode<synchronous>, transform_indices = @transform_3, window_bounds = array<i64: 64, 64>}, {pipeline_mode = #tpu.pipeline_mode<synchronous>, transform_indices = @transform_4, window_bounds = array<i64: 1, 64>}, {pipeline_mode = #tpu.pipeline_mode<synchronous>, transform_indices = @transform_5, window_bounds = array<i64: 64, 32>}, {pipeline_mode = #tpu.pipeline_mode<synchronous>, transform_indices = @transform_6, window_bounds = array<i64: 1, 32>}, {pipeline_mode = #tpu.pipeline_mode<synchronous>, transform_indices = @transform_7, window_bounds = array<i64: 32, 4>}, {pipeline_mode = #tpu.pipeline_mode<synchronous>, transform_indices = @transform_8, window_bounds = array<i64: 1, 4>}, {transform_indices = @transform_9, window_bounds = array<i64: 64, 4>}]} {
    %c0 = arith.constant 0 : index
    %c0_0 = arith.constant 0 : index
    %0 = vector.load %arg1[%c0, %c0_0] : memref<64x8xbf16, #tpu.memory_space<vmem>>, vector<64x8xbf16>
    %c0_1 = arith.constant 0 : index
    %c0_2 = arith.constant 0 : index
    %1 = vector.load %arg2[%c0_1, %c0_2] : memref<8x64xbf16, #tpu.memory_space<vmem>>, vector<8x64xbf16>
    %cst = arith.constant dense<0.000000e+00> : vector<64x64xf32>
    %2 = tpu.matmul %0, %1, %cst {dimension_numbers = #tpu.dot_dimension_numbers<[1], [0], [0], [1], [0, 0, 1, 1], [], []>} : vector<64x8xbf16>, vector<8x64xbf16>, vector<64x64xf32> -> vector<64x64xf32>
    %c0_3 = arith.constant 0 : index
    %c0_4 = arith.constant 0 : index
    %3 = vector.load %arg3[%c0_3, %c0_4] : memref<1x64xf32, #tpu.memory_space<vmem>>, vector<1x64xf32>
    %4 = vector.broadcast %3 : vector<1x64xf32> to vector<64x64xf32>
    %5 = arith.addf %2, %4 : vector<64x64xf32>
    %cst_5 = arith.constant 0.000000e+00 : f32
    %6 = vector.broadcast %cst_5 : f32 to vector<64x64xf32>
    %7 = arith.maximumf %5, %6 : vector<64x64xf32>
    %8 = arith.truncf %7 : vector<64x64xf32> to vector<64x64xbf16>
    %c0_6 = arith.constant 0 : index
    %c0_7 = arith.constant 0 : index
    %9 = vector.load %arg4[%c0_6, %c0_7] : memref<64x64xbf16, #tpu.memory_space<vmem>>, vector<64x64xbf16>
    %cst_8 = arith.constant dense<0.000000e+00> : vector<64x64xf32>
    %10 = tpu.matmul %8, %9, %cst_8 {dimension_numbers = #tpu.dot_dimension_numbers<[1], [0], [0], [1], [0, 0, 1, 1], [], []>} : vector<64x64xbf16>, vector<64x64xbf16>, vector<64x64xf32> -> vector<64x64xf32>
    %c0_9 = arith.constant 0 : index
    %c0_10 = arith.constant 0 : index
    %11 = vector.load %arg5[%c0_9, %c0_10] : memref<1x64xf32, #tpu.memory_space<vmem>>, vector<1x64xf32>
    %12 = vector.broadcast %11 : vector<1x64xf32> to vector<64x64xf32>
    %13 = arith.addf %10, %12 : vector<64x64xf32>
    %cst_11 = arith.constant 0.000000e+00 : f32
    %14 = vector.broadcast %cst_11 : f32 to vector<64x64xf32>
    %15 = arith.maximumf %13, %14 : vector<64x64xf32>
    %16 = arith.truncf %15 : vector<64x64xf32> to vector<64x64xbf16>
    %c0_12 = arith.constant 0 : index
    %c0_13 = arith.constant 0 : index
    %17 = vector.load %arg6[%c0_12, %c0_13] : memref<64x32xbf16, #tpu.memory_space<vmem>>, vector<64x32xbf16>
    %cst_14 = arith.constant dense<0.000000e+00> : vector<64x32xf32>
    %18 = tpu.matmul %16, %17, %cst_14 {dimension_numbers = #tpu.dot_dimension_numbers<[1], [0], [0], [1], [0, 0, 1, 1], [], []>} : vector<64x64xbf16>, vector<64x32xbf16>, vector<64x32xf32> -> vector<64x32xf32>
    %c0_15 = arith.constant 0 : index
    %c0_16 = arith.constant 0 : index
    %19 = vector.load %arg7[%c0_15, %c0_16] : memref<1x32xf32, #tpu.memory_space<vmem>>, vector<1x32xf32>
    %20 = vector.broadcast %19 : vector<1x32xf32> to vector<64x32xf32>
    %21 = arith.addf %18, %20 : vector<64x32xf32>
    %cst_17 = arith.constant 0.000000e+00 : f32
    %22 = vector.broadcast %cst_17 : f32 to vector<64x32xf32>
    %23 = arith.maximumf %21, %22 : vector<64x32xf32>
    %24 = arith.truncf %23 : vector<64x32xf32> to vector<64x32xbf16>
    %c0_18 = arith.constant 0 : index
    %c0_19 = arith.constant 0 : index
    %25 = vector.load %arg8[%c0_18, %c0_19] : memref<32x4xbf16, #tpu.memory_space<vmem>>, vector<32x4xbf16>
    %cst_20 = arith.constant dense<0.000000e+00> : vector<64x4xf32>
    %26 = tpu.matmul %24, %25, %cst_20 {dimension_numbers = #tpu.dot_dimension_numbers<[1], [0], [0], [1], [0, 0, 1, 1], [], []>} : vector<64x32xbf16>, vector<32x4xbf16>, vector<64x4xf32> -> vector<64x4xf32>
    %c0_21 = arith.constant 0 : index
    %c0_22 = arith.constant 0 : index
    %27 = vector.load %arg9[%c0_21, %c0_22] : memref<1x4xf32, #tpu.memory_space<vmem>>, vector<1x4xf32>
    %28 = vector.broadcast %27 : vector<1x4xf32> to vector<64x4xf32>
    %29 = arith.addf %26, %28 : vector<64x4xf32>
    %c0_23 = arith.constant 0 : index
    %c0_24 = arith.constant 0 : index
    %30 = vector.load %arg10[%c0_23, %c0_24] : memref<64x4xf32, #tpu.memory_space<vmem>>, vector<64x4xf32>
    tpu.vector_store %arg10[%c0_23, %c0_24], %29 {strides = array<i32>} : memref<64x4xf32, #tpu.memory_space<vmem>>, vector<64x4xf32>,
    return
  }
  func.func @transform_0(%arg0: i32) -> (i32, i32) {
    %c0_i32 = arith.constant 0 : i32
    %c0_i32_0 = arith.constant 0 : i32
    return %arg0, %c0_i32 : i32, i32
  }
  func.func @transform_1(%arg0: i32) -> (i32, i32) {
    %c0_i32 = arith.constant 0 : i32
    %c0_i32_0 = arith.constant 0 : i32
    %c0_i32_1 = arith.constant 0 : i32
    return %c0_i32, %c0_i32_0 : i32, i32
  }
  func.func @transform_2(%arg0: i32) -> (i32, i32) {
    %c0_i32 = arith.constant 0 : i32
    %c0_i32_0 = arith.constant 0 : i32
    %c0_i32_1 = arith.constant 0 : i32
    return %c0_i32, %c0_i32_0 : i32, i32
  }
  func.func @transform_3(%arg0: i32) -> (i32, i32) {
    %c0_i32 = arith.constant 0 : i32
    %c0_i32_0 = arith.constant 0 : i32
    %c0_i32_1 = arith.constant 0 : i32
    return %c0_i32, %c0_i32_0 : i32, i32
  }
  func.func @transform_4(%arg0: i32) -> (i32, i32) {
    %c0_i32 = arith.constant 0 : i32
    %c0_i32_0 = arith.constant 0 : i32
    %c0_i32_1 = arith.constant 0 : i32
    return %c0_i32, %c0_i32_0 : i32, i32
  }
  func.func @transform_5(%arg0: i32) -> (i32, i32) {
    %c0_i32 = arith.constant 0 : i32
    %c0_i32_0 = arith.constant 0 : i32
    %c0_i32_1 = arith.constant 0 : i32
    return %c0_i32, %c0_i32_0 : i32, i32
  }
  func.func @transform_6(%arg0: i32) -> (i32, i32) {
    %c0_i32 = arith.constant 0 : i32
    %c0_i32_0 = arith.constant 0 : i32
    %c0_i32_1 = arith.constant 0 : i32
    return %c0_i32, %c0_i32_0 : i32, i32
  }
  func.func @transform_7(%arg0: i32) -> (i32, i32) {
    %c0_i32 = arith.constant 0 : i32
    %c0_i32_0 = arith.constant 0 : i32
    %c0_i32_1 = arith.constant 0 : i32
    return %c0_i32, %c0_i32_0 : i32, i32
  }
  func.func @transform_8(%arg0: i32) -> (i32, i32) {
    %c0_i32 = arith.constant 0 : i32
    %c0_i32_0 = arith.constant 0 : i32
    %c0_i32_1 = arith.constant 0 : i32
    return %c0_i32, %c0_i32_0 : i32, i32
  }
  func.func @transform_9(%arg0: i32) -> (i32, i32) {
    %c0_i32 = arith.constant 0 : i32
    %c0_i32_0 = arith.constant 0 : i32
    return %arg0, %c0_i32 : i32, i32
  }
}

</mosaic_0001>

<llo_original>
// kernel: qnetwork_forward.1
$region0: #{qnetwork_forward.1}
  #allocation0 [shape = 'u32[]', space=smem, size = 0x4, offset = 0x4, fixed_abs, tag = 'smem constant byte address 0x4 - core index']
  #allocation1 [shape = 'u32[72,128]{1,0:T(1,128)}', space=vmem, size = 0x9000, scoped, tag = 'internal scratch']
  %s0 = inlined_call_operand.vmem [shape: bf16[64,8], index: 0, kind: input, shape index: {}]
  %s1 = inlined_call_operand.vmem [shape: bf16[8,64], index: 1, kind: input, shape index: {}]
  %s2 = inlined_call_operand.vmem [shape: f32[1,64], index: 2, kind: input, shape index: {}]
  %s3 = inlined_call_operand.vmem [shape: bf16[64,64], index: 3, kind: input, shape index: {}]
  %s4 = inlined_call_operand.vmem [shape: f32[1,64], index: 4, kind: input, shape index: {}]
  %s5 = inlined_call_operand.vmem [shape: bf16[64,32], index: 5, kind: input, shape index: {}]
  %s6 = inlined_call_operand.vmem [shape: f32[1,32], index: 6, kind: input, shape index: {}]
  %s7 = inlined_call_operand.vmem [shape: bf16[32,4], index: 7, kind: input, shape index: {}]
  %s8 = inlined_call_operand.vmem [shape: f32[1,4], index: 8, kind: input, shape index: {}]
  %s9 = inlined_call_operand.vmem [shape: f32[64,4], index: 9, kind: output, shape index: {}]
  %s10 = sld [smem:[#allocation0]]
  $region46: #{qnetwork_forward.1} parent=0
    _
  %s12 = ssub.s32 1, %s10
  %s13 = scalar_select 0, %s12, %s10
  // Predicated region
  $region2: #{qnetwork_forward.1} parent=0 // pred_check
    _
  $region3: #{qnetwork_forward.1} parent=0 // pred_check_branch
    %15 = sbr.rel (0) target = $region5
  $region4: #{qnetwork_forward.1} parent=0 // pred_region
    _
  $region5: #{qnetwork_forward.1} parent=0 // pred_fallthru
    _
  // Predicated region
  $region6: #{qnetwork_forward.1} parent=0 // pred_check
    _
  $region7: #{qnetwork_forward.1} parent=0 // pred_check_branch
    %17 = sbr.rel (0) target = $region9
  $region8: #{qnetwork_forward.1} parent=0 // pred_region
    _
  $region9: #{qnetwork_forward.1} parent=0 // pred_fallthru
    _
  // Predicated region
  $region10: #{qnetwork_forward.1} parent=0 // pred_check
    _
  $region11: #{qnetwork_forward.1} parent=0 // pred_check_branch
    %19 = sbr.rel (0) target = $region13
  $region12: #{qnetwork_forward.1} parent=0 // pred_region
    _
  $region13: #{qnetwork_forward.1} parent=0 // pred_fallthru
    _
  // Predicated region
  $region14: #{qnetwork_forward.1} parent=0 // pred_check
    _
  $region15: #{qnetwork_forward.1} parent=0 // pred_check_branch
    %21 = sbr.rel (0) target = $region17
  $region16: #{qnetwork_forward.1} parent=0 // pred_region
    _
  $region17: #{qnetwork_forward.1} parent=0 // pred_fallthru
    _
  // Predicated region
  $region18: #{qnetwork_forward.1} parent=0 // pred_check
    _
  $region19: #{qnetwork_forward.1} parent=0 // pred_check_branch
    %23 = sbr.rel (0) target = $region21
  $region20: #{qnetwork_forward.1} parent=0 // pred_region
    _
  $region21: #{qnetwork_forward.1} parent=0 // pred_fallthru
    _
  // Predicated region
  $region22: #{qnetwork_forward.1} parent=0 // pred_check
    _
  $region23: #{qnetwork_forward.1} parent=0 // pred_check_branch
    %25 = sbr.rel (0) target = $region25
  $region24: #{qnetwork_forward.1} parent=0 // pred_region
    _
  $region25: #{qnetwork_forward.1} parent=0 // pred_fallthru
    _
  // Predicated region
  $region26: #{qnetwork_forward.1} parent=0 // pred_check
    _
  $region27: #{qnetwork_forward.1} parent=0 // pred_check_branch
    %27 = sbr.rel (0) target = $region29
  $region28: #{qnetwork_forward.1} parent=0 // pred_region
    _
  $region29: #{qnetwork_forward.1} parent=0 // pred_fallthru
    _
  // Predicated region
  $region30: #{qnetwork_forward.1} parent=0 // pred_check
    _
  $region31: #{qnetwork_forward.1} parent=0 // pred_check_branch
    %29 = sbr.rel (0) target = $region33
  $region32: #{qnetwork_forward.1} parent=0 // pred_region
    _
  $region33: #{qnetwork_forward.1} parent=0 // pred_fallthru
    _
  // Predicated region
  $region34: #{qnetwork_forward.1} parent=0 // pred_check
    _
  $region35: #{qnetwork_forward.1} parent=0 // pred_check_branch
    %31 = sbr.rel (0) target = $region37
  $region36: #{qnetwork_forward.1} parent=0 // pred_region
    _
  $region37: #{qnetwork_forward.1} parent=0 // pred_fallthru
    _
  %v33 = vld [vmem:[%s0] sm:$0xf]
  %v34 = vld [vmem:[%s0 + $0x4] sm:$0xf]
  %v35 = vld [vmem:[%s0 + $0x8] sm:$0xf]
  %v36 = vld [vmem:[%s0 + $0xc] sm:$0xf]
  %v37 = vld [vmem:[%s0 + $0x10] sm:$0xf]
  %v38 = vld [vmem:[%s0 + $0x14] sm:$0xf]
  %v39 = vld [vmem:[%s0 + $0x18] sm:$0xf]
  %v40 = vld [vmem:[%s0 + $0x1c] sm:$0xf]
  %v41 = vld [vmem:[%s1] sm:$0xf]
  %v42 = vld [vmem:[%s2] sm:$0x1]
  %v44 = vperm.slane %v42, 0
  %v54 = vunpack.c.l.b16 %v33
  %v55 = vunpack.c.l.b16 %v34
  %v56 = vunpack.c.l.b16 %v35
  %v57 = vunpack.c.l.b16 %v36
  %v58 = vunpack.c.l.b16 %v37
  %v59 = vunpack.c.l.b16 %v38
  %v60 = vunpack.c.l.b16 %v39
  %v61 = vunpack.c.l.b16 %v40
  %v62 = vpack.c.b16 %v55, %v54
  %v63 = vpack.c.b16 %v57, %v56
  %v64 = vpack.c.b16 %v59, %v58
  %v65 = vpack.c.b16 %v61, %v60
  %vm66 = vcmask 64512
  %v68 = vsel %vm66, %v62, 0
  %v71 = vsel %vm66, %v63, 0
  %v74 = vsel %vm66, %v64, 0
  %v77 = vsel %vm66, %v65, 0
  %vm79 = vcmask 1043456
  %v81 = vsel %vm79, %v41, 0
  %83 = vmatpush.bf16.msra.mxu0 0
  %84 = vmatpush.bf16.msra.mxu0 0
  %85 = vmatpush.bf16.msra.mxu0 0
  %86 = vmatpush.bf16.msra.mxu0 0
  %87 = vmatpush.bf16.msra.mxu0 0
  %88 = vmatpush.bf16.msra.mxu0 0
  %89 = vmatpush.bf16.msra.mxu0 0
  %90 = vmatpush.bf16.msra.mxu0 %v81
  %91 = vmatmul.bf16.gmra.mxu0 %v68
  %v92 = vpop.f32.mrf.mxu0
  %v93 = vadd.f32 %v44, %v92
  %v94 = vpop.f32.mrf.mxu0
  %v95 = vadd.f32 %v44, %v94
  %96 = vmatmul.bf16.gmra.mxu0 %v71
  %v97 = vpop.f32.mrf.mxu0
  %v98 = vadd.f32 %v44, %v97
  %v99 = vpop.f32.mrf.mxu0
  %v100 = vadd.f32 %v44, %v99
  %101 = vmatmul.bf16.gmra.mxu0 %v74
  %v102 = vpop.f32.mrf.mxu0
  %v103 = vadd.f32 %v44, %v102
  %v104 = vpop.f32.mrf.mxu0
  %v105 = vadd.f32 %v44, %v104
  %106 = vmatmul.bf16.gmra.mxu0 %v77
  %v107 = vpop.f32.mrf.mxu0
  %v108 = vadd.f32 %v44, %v107
  %v109 = vpop.f32.mrf.mxu0
  %v110 = vadd.f32 %v44, %v109
  %111 = vdwg.mxu0
  %v112 = vmax.f32 %v93, 0.0
  %v113 = vmax.f32 %v95, 0.0
  %v114 = vmax.f32 %v98, 0.0
  %v115 = vmax.f32 %v100, 0.0
  %v116 = vmax.f32 %v103, 0.0
  %v117 = vmax.f32 %v105, 0.0
  %v118 = vmax.f32 %v108, 0.0
  %v119 = vmax.f32 %v110, 0.0
  %v120 = vpack.c.bf16 %v113, %v112
  %v121 = vpack.c.bf16 %v115, %v114
  %v122 = vpack.c.bf16 %v117, %v116
  %v123 = vpack.c.bf16 %v119, %v118
  %v124 = vld [vmem:[%s3] sm:$0xf]
  %v125 = vld [vmem:[%s3 + $0x4] sm:$0xf]
  %v126 = vld [vmem:[%s3 + $0x8] sm:$0xf]
  %v127 = vld [vmem:[%s3 + $0xc] sm:$0xf]
  %v128 = vld [vmem:[%s3 + $0x10] sm:$0xf]
  %v129 = vld [vmem:[%s3 + $0x14] sm:$0xf]
  %v130 = vld [vmem:[%s3 + $0x18] sm:$0xf]
  %v131 = vld [vmem:[%s3 + $0x1c] sm:$0xf]
  %v132 = vld [vmem:[%s4] sm:$0x1]
  %v134 = vperm.slane %v132, 0
  %v144 = vunpack.c.l.b16 %v124
  %v145 = vunpack.c.l.b16 %v125
  %v146 = vunpack.c.l.b16 %v126
  %v147 = vunpack.c.l.b16 %v127
  %v148 = vunpack.c.l.b16 %v128
  %v149 = vunpack.c.l.b16 %v129
  %v150 = vunpack.c.l.b16 %v130
  %v151 = vunpack.c.l.b16 %v131
  %v152 = vpack.c.b16 %v145, %v144
  %v153 = vpack.c.b16 %v147, %v146
  %v154 = vpack.c.b16 %v149, %v148
  %v155 = vpack.c.b16 %v151, %v150
  %vm160 = vcmask 523264
  %v162 = vsel %vm160, %v120, 0
  %v165 = vsel %vm160, %v121, 0
  %v168 = vsel %vm160, %v122, 0
  %v171 = vsel %vm160, %v123, 0
  %173 = vmatpush.bf16.msra.mxu0 0
  %174 = vmatpush.bf16.msra.mxu0 0
  %175 = vmatpush.bf16.msra.mxu0 0
  %176 = vmatpush.bf16.msra.mxu0 0
  %177 = vmatpush.bf16.msra.mxu0 %v155
  %178 = vmatpush.bf16.msra.mxu0 %v154
  %179 = vmatpush.bf16.msra.mxu0 %v153
  %180 = vmatpush.bf16.msra.mxu0 %v152
  %181 = vmatmul.bf16.gmra.mxu0 %v162
  %v182 = vpop.f32.mrf.mxu0
  %v183 = vadd.f32 %v134, %v182
  %v184 = vpop.f32.mrf.mxu0
  %v185 = vadd.f32 %v134, %v184
  %186 = vmatmul.bf16.gmra.mxu0 %v165
  %v187 = vpop.f32.mrf.mxu0
  %v188 = vadd.f32 %v134, %v187
  %v189 = vpop.f32.mrf.mxu0
  %v190 = vadd.f32 %v134, %v189
  %191 = vmatmul.bf16.gmra.mxu0 %v168
  %v192 = vpop.f32.mrf.mxu0
  %v193 = vadd.f32 %v134, %v192
  %v194 = vpop.f32.mrf.mxu0
  %v195 = vadd.f32 %v134, %v194
  %196 = vmatmul.bf16.gmra.mxu0 %v171
  %v197 = vpop.f32.mrf.mxu0
  %v198 = vadd.f32 %v134, %v197
  %v199 = vpop.f32.mrf.mxu0
  %v200 = vadd.f32 %v134, %v199
  %201 = vdwg.mxu0
  %v202 = vmax.f32 %v183, 0.0
  %v203 = vmax.f32 %v185, 0.0
  %v204 = vmax.f32 %v188, 0.0
  %v205 = vmax.f32 %v190, 0.0
  %v206 = vmax.f32 %v193, 0.0
  %v207 = vmax.f32 %v195, 0.0
  %v208 = vmax.f32 %v198, 0.0
  %v209 = vmax.f32 %v200, 0.0
  %v210 = vpack.c.bf16 %v203, %v202
  %v211 = vpack.c.bf16 %v205, %v204
  %v212 = vpack.c.bf16 %v207, %v206
  %v213 = vpack.c.bf16 %v209, %v208
  %v214 = vld [vmem:[%s5] sm:$0xf]
  %v215 = vld [vmem:[%s5 + $0x4] sm:$0xf]
  %v216 = vld [vmem:[%s5 + $0x8] sm:$0xf]
  %v217 = vld [vmem:[%s5 + $0xc] sm:$0xf]
  %v218 = vld [vmem:[%s5 + $0x10] sm:$0xf]
  %v219 = vld [vmem:[%s5 + $0x14] sm:$0xf]
  %v220 = vld [vmem:[%s5 + $0x18] sm:$0xf]
  %v221 = vld [vmem:[%s5 + $0x1c] sm:$0xf]
  %v222 = vld [vmem:[%s6] sm:$0x1]
  %v224 = vperm.slane %v222, 0
  %v234 = vunpack.c.l.b16 %v214
  %v235 = vunpack.c.l.b16 %v215
  %v236 = vunpack.c.l.b16 %v216
  %v237 = vunpack.c.l.b16 %v217
  %v238 = vunpack.c.l.b16 %v218
  %v239 = vunpack.c.l.b16 %v219
  %v240 = vunpack.c.l.b16 %v220
  %v241 = vunpack.c.l.b16 %v221
  %v242 = vpack.c.b16 %v235, %v234
  %v243 = vpack.c.b16 %v237, %v236
  %v244 = vpack.c.b16 %v239, %v238
  %v245 = vpack.c.b16 %v241, %v240
  %v251 = vsel %vm160, %v210, 0
  %v254 = vsel %vm160, %v211, 0
  %v257 = vsel %vm160, %v212, 0
  %v260 = vsel %vm160, %v213, 0
  %262 = vmatpush.bf16.msra.mxu0 0
  %263 = vmatpush.bf16.msra.mxu0 0
  %264 = vmatpush.bf16.msra.mxu0 0
  %265 = vmatpush.bf16.msra.mxu0 0
  %266 = vmatpush.bf16.msra.mxu0 %v245
  %267 = vmatpush.bf16.msra.mxu0 %v244
  %268 = vmatpush.bf16.msra.mxu0 %v243
  %269 = vmatpush.bf16.msra.mxu0 %v242
  %270 = vmatmul.bf16.gmra.mxu0 %v251
  %v271 = vpop.f32.mrf.mxu0
  %v272 = vadd.f32 %v224, %v271
  %v273 = vpop.f32.mrf.mxu0
  %v274 = vadd.f32 %v224, %v273
  %275 = vmatmul.bf16.gmra.mxu0 %v254
  %v276 = vpop.f32.mrf.mxu0
  %v277 = vadd.f32 %v224, %v276
  %v278 = vpop.f32.mrf.mxu0
  %v279 = vadd.f32 %v224, %v278
  %280 = vmatmul.bf16.gmra.mxu0 %v257
  %v281 = vpop.f32.mrf.mxu0
  %v282 = vadd.f32 %v224, %v281
  %v283 = vpop.f32.mrf.mxu0
  %v284 = vadd.f32 %v224, %v283
  %285 = vmatmul.bf16.gmra.mxu0 %v260
  %v286 = vpop.f32.mrf.mxu0
  %v287 = vadd.f32 %v224, %v286
  %v288 = vpop.f32.mrf.mxu0
  %v289 = vadd.f32 %v224, %v288
  %290 = vdwg.mxu0
  %v291 = vmax.f32 %v272, 0.0
  %v292 = vmax.f32 %v274, 0.0
  %v293 = vmax.f32 %v277, 0.0
  %v294 = vmax.f32 %v279, 0.0
  %v295 = vmax.f32 %v282, 0.0
  %v296 = vmax.f32 %v284, 0.0
  %v297 = vmax.f32 %v287, 0.0
  %v298 = vmax.f32 %v289, 0.0
  %v299 = vpack.c.bf16 %v292, %v291
  %v300 = vpack.c.bf16 %v294, %v293
  %v301 = vpack.c.bf16 %v296, %v295
  %v302 = vpack.c.bf16 %v298, %v297
  %v303 = vld [vmem:[%s7] sm:$0xf]
  %v304 = vld [vmem:[%s7 + $0x4] sm:$0xf]
  %v305 = vld [vmem:[%s7 + $0x8] sm:$0xf]
  %v306 = vld [vmem:[%s7 + $0xc] sm:$0xf]
  %v307 = vld [vmem:[%s8] sm:$0x1]
  %v309 = vperm.slane %v307, 0
  %v315 = vunpack.c.l.b16 %v303
  %v316 = vunpack.c.l.b16 %v304
  %v317 = vunpack.c.l.b16 %v305
  %v318 = vunpack.c.l.b16 %v306
  %v319 = vpack.c.b16 %v316, %v315
  %v320 = vpack.c.b16 %v318, %v317
  %vm323 = vcmask 261120
  %v325 = vsel %vm323, %v299, 0
  %v328 = vsel %vm323, %v300, 0
  %v331 = vsel %vm323, %v301, 0
  %v334 = vsel %vm323, %v302, 0
  %336 = vmatpush.bf16.msra.mxu0 0
  %337 = vmatpush.bf16.msra.mxu0 0
  %338 = vmatpush.bf16.msra.mxu0 0
  %339 = vmatpush.bf16.msra.mxu0 0
  %340 = vmatpush.bf16.msra.mxu0 0
  %341 = vmatpush.bf16.msra.mxu0 0
  %342 = vmatpush.bf16.msra.mxu0 %v320
  %343 = vmatpush.bf16.msra.mxu0 %v319
  %344 = vmatmul.bf16.gmra.mxu0 %v325
  %v345 = vpop.f32.mrf.mxu0
  %v346 = vadd.f32 %v309, %v345
  %v347 = vpop.f32.mrf.mxu0
  %v348 = vadd.f32 %v309, %v347
  %349 = vmatmul.bf16.gmra.mxu0 %v328
  %v350 = vpop.f32.mrf.mxu0
  %v351 = vadd.f32 %v309, %v350
  %v352 = vpop.f32.mrf.mxu0
  %v353 = vadd.f32 %v309, %v352
  %354 = vmatmul.bf16.gmra.mxu0 %v331
  %v355 = vpop.f32.mrf.mxu0
  %v356 = vadd.f32 %v309, %v355
  %v357 = vpop.f32.mrf.mxu0
  %v358 = vadd.f32 %v309, %v357
  %359 = vmatmul.bf16.gmra.mxu0 %v334
  %v360 = vpop.f32.mrf.mxu0
  %v361 = vadd.f32 %v309, %v360
  %v362 = vpop.f32.mrf.mxu0
  %v363 = vadd.f32 %v309, %v362
  %364 = vdwg.mxu0
  %vm365 = vcmask 31744
  %366 = vst.msk [vmem:[%s9] sm:$0xff] %vm365, %v346
  %367 = vst.msk [vmem:[%s9 + $0x8] sm:$0xff] %vm365, %v348
  %368 = vst.msk [vmem:[%s9 + $0x10] sm:$0xff] %vm365, %v351
  %369 = vst.msk [vmem:[%s9 + $0x18] sm:$0xff] %vm365, %v353
  %370 = vst.msk [vmem:[%s9 + $0x20] sm:$0xff] %vm365, %v356
  %371 = vst.msk [vmem:[%s9 + $0x28] sm:$0xff] %vm365, %v358
  %372 = vst.msk [vmem:[%s9 + $0x30] sm:$0xff] %vm365, %v361
  %373 = vst.msk [vmem:[%s9 + $0x38] sm:$0xff] %vm365, %v363
  // Predicated region
  $region38: #{qnetwork_forward.1} parent=0 // pred_check
    _
  $region39: #{qnetwork_forward.1} parent=0 // pred_check_branch
    %375 = sbr.rel (0) target = $region41
  $region40: #{qnetwork_forward.1} parent=0 // pred_region
    _
  $region41: #{qnetwork_forward.1} parent=0 // pred_fallthru
    _
  // Predicated region
  $region42: #{qnetwork_forward.1} parent=0 // pred_check
    _
  $region43: #{qnetwork_forward.1} parent=0 // pred_check_branch
    %377 = sbr.rel (0) target = $region45
  $region44: #{qnetwork_forward.1} parent=0 // pred_region
    _
  $region45: #{qnetwork_forward.1} parent=0 // pred_fallthru
    _

</llo_original>
